<compile_context>
chip_gen: v7x
topology: tpu7x:2x2x1
jax: 0.10.0
libtpu: 0.0.40
codegen_flags: <defaults>
</compile_context>

<pallas_src>
import functools

import jax
import jax.numpy as jnp
from jax import lax
from jax.experimental import pallas as pl
from jax.experimental.pallas import tpu as pltpu


def _round_up(n, m):
    return ((n + m - 1) // m) * m


def _vmem_limit_bytes():
    # Derive the scoped-VMEM limit from the chip; explicit fallback (48 MiB)
    # instead of None so v5e never drops to the 16 MiB compiler default.
    try:
        return int(pltpu.get_tpu_info().vmem_capacity_bytes * 3 // 4)
    except Exception:
        return 48 * 1024 * 1024


_VMEM_LIMIT = _vmem_limit_bytes()


def _compiler_params(n_grid_axes):
    return pltpu.CompilerParams(
        dimension_semantics=("parallel",) * n_grid_axes,
        vmem_limit_bytes=_VMEM_LIMIT)


def _activate(y, act):
    if act == "lrelu":
        return jnp.maximum(y, 0.2 * y)      # 1 mul + 1 max, no compare/select
    if act == "relu":
        return jnp.maximum(y, 0.0)
    if act == "tanh":
        return jnp.tanh(y)                  # EUP
    return y


def _cout_tile(cout, want):
    if want is None:
        return cout
    t = min(cout, want)
    if cout % t or t % 8:                   # keep block sublane dim 8-aligned
        return cout
    return t


# ----------------------------------------------------------------------------
# Downsampling kernel: 4x4/stride-2 conv folded to 4 taps over a space-to-depth
# view, K-stacked into ONE MXU matmul, fused with bias/InstanceNorm/LeakyReLU.
# ----------------------------------------------------------------------------
def _down_kernel(x_ref, w_ref, p_ref, o_ref, *, ho, wo, norm, act):
    # x_ref : (1, Kp, Pp)        space-to-depth, zero-padded, flattened input
    # w_ref : (CT, 4*Kp)         K-stacked weight (4 2x2 taps along K)
    # p_ref : (CT, 3)            [bias, gamma, beta] columns, f32
    # o_ref : (1, CT, ho*(wo+1)) wide output (wo valid + 1 junk col per row)
    row = wo + 1
    out_len = ho * row
    rhs = jnp.concatenate(
        [x_ref[0, :, a * row + b:a * row + b + out_len]
         for a in (0, 1) for b in (0, 1)], axis=0)              # (4*Kp, L)
    y = jnp.dot(w_ref[...], rhs, preferred_element_type=jnp.float32)
    if norm:
        # One-pass masked InstanceNorm stats (f32).  Conv bias is skipped here:
        # PyTorch uses bias=False when norm=True and it would be cancelled by
        # the mean subtraction anyway.
        col = lax.broadcasted_iota(jnp.int32, (1, out_len), 1) % row
        mask = col < wo
        inv_cnt = 1.0 / float(ho * wo)
        ym = jnp.where(mask, y, 0.0)
        s1 = jnp.sum(ym, axis=1, keepdims=True)
        s2 = jnp.sum(ym * ym, axis=1, keepdims=True)
        mean = s1 * inv_cnt
        var = jnp.maximum(s2 * inv_cnt - mean * mean, 0.0)
        scale = lax.rsqrt(var + 1e-5) * p_ref[:, 1:2]
        off = p_ref[:, 2:3] - mean * scale
        y = y * scale + off
    else:
        y = y + p_ref[:, 0:1]
    o_ref[0] = _activate(y, act).astype(o_ref.dtype)


def down_block(x, layer, *, norm, act="lrelu", dtype=jnp.bfloat16, cout_tile=None):
    # x: (N, Cin, H, W) -> (N, Cout, H//2, W//2)
    N, Cin, H, W = x.shape
    assert H % 2 == 0 and W % 2 == 0
    Ho, Wo = H // 2, W // 2
    Cout = layer["w"].shape[0]
    kp = _round_up(4 * Cin, 8)
    assert layer["w"].shape[1] == 4 * kp, (layer["w"].shape, kp)
    ct = _cout_tile(Cout, cout_tile)

    row = Wo + 1
    l_in = (Ho + 1) * row
    pp = _round_up(l_in + 8, 128)

    # Space-to-depth of the zero-padded input (1x traffic, not 16x im2col).
    # TODO(synk): fold this relayout into the producing kernel's stores to kill
    #             the extra HBM round-trip between layers.
    xpad = jnp.pad(x, ((0, 0), (0, 0), (1, 1), (1, 1)))
    s2d = jnp.stack([xpad[:, :, pi::2, pj::2]
                     for pi in (0, 1) for pj in (0, 1)], axis=1)
    s2d = s2d.reshape(N, 4 * Cin, l_in).astype(dtype)
    s2d = jnp.pad(s2d, ((0, 0), (0, kp - 4 * Cin), (0, pp - l_in)))

    out_len = Ho * row
    kernel = functools.partial(_down_kernel, ho=Ho, wo=Wo, norm=norm, act=act)
    out = pl.pallas_call(
        kernel,
        out_shape=jax.ShapeDtypeStruct((N, Cout, out_len), dtype),
        grid=(N, Cout // ct),
        in_specs=[
            pl.BlockSpec((1, kp, pp), lambda n, j: (n, 0, 0)),
            pl.BlockSpec((ct, 4 * kp), lambda n, j: (j, 0)),
            pl.BlockSpec((ct, 3), lambda n, j: (j, 0)),
        ],
        out_specs=pl.BlockSpec((1, ct, out_len), lambda n, j: (n, j, 0)),
        compiler_params=_compiler_params(2),
    )(s2d, layer["w"], layer["p"])
    return out.reshape(N, Cout, Ho, row)[:, :, :, :Wo]


# ----------------------------------------------------------------------------
# Upsampling kernel: ConvTranspose(4x4,s2,p1) via sub-pixel phase decomposition
# (4 output phases).  Per phase, all taps of ALL concat parts are K-stacked
# into ONE MXU matmul; fused bias/InstanceNorm(over all phases)/ReLU/Tanh.
# ----------------------------------------------------------------------------
def _up_kernel(*refs, n_parts, hin, win, norm, act):
    # x_refs : n_parts x (1, Ci_p, Pp) zero-padded flattened parts (concat-free)
    # w_ref  : (4, CT, 4*sum(Ci_p))    per-phase K-stacked weight
    # p_ref  : (CT, 3)                 [bias, gamma, beta]
    # o_ref  : (1, 4, CT, hin*(win+2))
    x_refs = refs[:n_parts]
    w_ref, p_ref, o_ref = refs[n_parts:]
    row = win + 2
    out_len = hin * row

    def phase_out(q, qy, qx):
        pieces = []
        for xr in x_refs:                       # part-major, tap-minor order
            for a in (0, 1):
                for b in (0, 1):
                    s = (qy + a) * row + (qx + b)
                    pieces.append(xr[0, :, s:s + out_len])
        rhs = jnp.concatenate(pieces, axis=0)   # (4*sum(Ci_p), L)
        return jnp.dot(w_ref[q], rhs, preferred_element_type=jnp.float32)

    phase_ids = ((0, 0), (0, 1), (1, 0), (1, 1))
    if norm:
        col = lax.broadcasted_iota(jnp.int32, (1, out_len), 1) % row
        mask = col < win
        inv_cnt = 1.0 / float(4 * hin * win)
        phases, s1, s2 = [], 0.0, 0.0
        for q, (qy, qx) in enumerate(phase_ids):
            y = phase_out(q, qy, qx)
            ym = jnp.where(mask, y, 0.0)
            s1 = s1 + jnp.sum(ym, axis=1, keepdims=True)
            s2 = s2 + jnp.sum(ym * ym, axis=1, keepdims=True)
            phases.append(y)
        mean = s1 * inv_cnt
        var = jnp.maximum(s2 * inv_cnt - mean * mean, 0.0)
        scale = lax.rsqrt(var + 1e-5) * p_ref[:, 1:2]     # hoisted out of loop
        off = p_ref[:, 2:3] - mean * scale
        for q in range(4):
            o_ref[0, q] = _activate(phases[q] * scale + off, act).astype(o_ref.dtype)
    else:
        bias = p_ref[:, 0:1]
        for q, (qy, qx) in enumerate(phase_ids):
            y = phase_out(q, qy, qx) + bias
            o_ref[0, q] = _activate(y, act).astype(o_ref.dtype)


def up_block(parts, layer, *, norm, act, dtype=jnp.bfloat16, cout_tile=None):
    # parts: list of (N, Ci, H, W) tensors PyTorch would concat on channels;
    # the concat never materializes (split-weight convolution).
    N, _, H, W = parts[0].shape
    Cout = layer["w"].shape[1]
    ct = _cout_tile(Cout, cout_tile)
    row = W + 2
    l_in = (H + 2) * row
    pp = _round_up(l_in + 8, 128)

    flats, kps = [], []
    for xp in parts:
        ci = xp.shape[1]
        cip = _round_up(ci, 8)
        kps.append(cip)
        xpad = jnp.pad(xp, ((0, 0), (0, 0), (1, 1), (1, 1)))
        xf = xpad.reshape(N, ci, l_in).astype(dtype)
        flats.append(jnp.pad(xf, ((0, 0), (0, cip - ci), (0, pp - l_in))))
    assert layer["w"].shape[2] == 4 * sum(kps), (layer["w"].shape, kps)

    out_len = H * row
    n_parts = len(parts)
    kernel = functools.partial(_up_kernel, n_parts=n_parts, hin=H, win=W,
                               norm=norm, act=act)
    in_specs = (
        [pl.BlockSpec((1, f.shape[1], pp), lambda n, j: (n, 0, 0)) for f in flats]
        + [pl.BlockSpec((4, ct, layer["w"].shape[2]), lambda n, j: (0, j, 0)),
           pl.BlockSpec((ct, 3), lambda n, j: (j, 0))]
    )
    out = pl.pallas_call(
        kernel,
        out_shape=jax.ShapeDtypeStruct((N, 4, Cout, out_len), dtype),
        grid=(N, Cout // ct),
        in_specs=in_specs,
        out_specs=pl.BlockSpec((1, 4, ct, out_len), lambda n, j: (n, 0, j, 0)),
        compiler_params=_compiler_params(2),
    )(*flats, layer["w"], layer["p"])
    # depth-to-space: phase q=(qy,qx) holds output pixels (2m+qy, 2n+qx)
    out = out.reshape(N, 2, 2, Cout, H, row)[:, :, :, :, :, :W]
    out = jnp.transpose(out, (0, 3, 4, 1, 5, 2)).reshape(N, Cout, 2 * H, 2 * W)
    return out


# ----------------------------------------------------------------------------
# Weight packing (done ONCE outside jit) + parameter init / prep
# ----------------------------------------------------------------------------
def _pack_down_weight(w):
    # torch Conv2d weight (Cout, Cin, 4, 4) -> (Cout, 4*Kp), Kp=round_up(4Cin,8)
    # K order: tap t=2a+b major; within a tap, s2d channel (2pi+pj)*Cin+ci.
    cout, cin = w.shape[0], w.shape[1]
    kp = _round_up(4 * cin, 8)
    taps = []
    for a in (0, 1):
        for b in (0, 1):
            cols = [w[:, :, 2 * a + pi, 2 * b + pj]
                    for pi in (0, 1) for pj in (0, 1)]
            t = jnp.concatenate(cols, axis=1)                  # (Cout, 4*Cin)
            taps.append(jnp.pad(t, ((0, 0), (0, kp - 4 * cin))))
    return jnp.concatenate(taps, axis=1)                       # (Cout, 4*Kp)


def _pack_up_weight(w_parts):
    # w_parts: list of torch ConvTranspose2d weight slices (Ci, Cout, 4, 4)
    # -> (4 phases q=2qy+qx, Cout, 4*sum(round_up(Ci,8)))
    # K order: part major, tap t=2a+b minor.  Output phase (qy,qx), tap (a,b)
    # uses kernel element (3-qy-2a, 3-qx-2b) at padded-input offset (qy+a,qx+b).
    phases = []
    for qy in (0, 1):
        for qx in (0, 1):
            blocks = []
            for wp in w_parts:
                ci = wp.shape[0]
                cip = _round_up(ci, 8)
                for a in (0, 1):
                    for b in (0, 1):
                        m = jnp.transpose(wp[:, :, 3 - qy - 2 * a, 3 - qx - 2 * b])
                        blocks.append(jnp.pad(m, ((0, 0), (0, cip - ci))))
            phases.append(jnp.concatenate(blocks, axis=1))
    return jnp.stack(phases, axis=0)


def _pack_affine(cout, bias=None, gamma=None, beta=None):
    def col(v, default):
        if v is None:
            return jnp.full((cout,), default, jnp.float32)
        return jnp.asarray(v, jnp.float32).reshape(cout)
    return jnp.stack([col(bias, 0.0), col(gamma, 1.0), col(beta, 0.0)], axis=1)


def init_params(key, config):
    # Raw PyTorch-layout parameters (Conv2d: (Cout,Cin,k,k),
    # ConvTranspose2d: (Cin,Cout,k,k)), matching the module __init__.
    hc, ic, oc, k = (config["hidden_channels"], config["in_channels"],
                     config["out_channels"], config["kernel_size"])
    keys = iter(jax.random.split(key, 64))

    def rnd(shape, scale=0.05):
        return scale * jax.random.normal(next(keys), shape, jnp.float32)

    down_specs = [(ic, hc, False), (hc, 2 * hc, True), (2 * hc, 4 * hc, True),
                  (4 * hc, 8 * hc, True), (8 * hc, 8 * hc, True),
                  (8 * hc, 8 * hc, True), (8 * hc, 8 * hc, True),
                  (8 * hc, 8 * hc, False)]
    down = []
    for cin, cout, norm in down_specs:
        p = {"w": rnd((cout, cin, k, k))}
        if norm:
            p["gamma"] = 1.0 + rnd((cout,), 0.1)
            p["beta"] = rnd((cout,), 0.1)
        else:
            p["b"] = rnd((cout,), 0.1)
        down.append(p)

    up_specs = [(8 * hc, 8 * hc), (16 * hc, 8 * hc), (16 * hc, 8 * hc),
                (16 * hc, 8 * hc), (16 * hc, 4 * hc), (8 * hc, 2 * hc),
                (4 * hc, hc)]
    up = []
    for cin, cout in up_specs:
        up.append({"w": rnd((cin, cout, k, k)),
                   "gamma": 1.0 + rnd((cout,), 0.1),
                   "beta": rnd((cout,), 0.1)})

    feat = {"w": rnd((2 * hc, oc, k, k)), "b": rnd((oc,), 0.1)}
    return {"down": down, "up": up, "feat": feat}


def prepare_params(params, config, dtype=jnp.bfloat16):
    # All relayout / splitting / dtype casting happens here, outside jit.
    hc, oc = config["hidden_channels"], config["out_channels"]
    down = []
    for p in params["down"]:
        cout = p["w"].shape[0]
        down.append({"w": _pack_down_weight(p["w"]).astype(dtype),
                     "p": _pack_affine(cout, p.get("b"), p.get("gamma"),
                                       p.get("beta"))})
    up = []
    prev_out = 8 * hc                 # channels produced by the layer feeding up1
    for p in params["up"]:
        w = p["w"]
        cin, cout = w.shape[0], w.shape[1]
        parts_w = [w] if cin == prev_out else [w[:prev_out], w[prev_out:]]
        up.append({"w": _pack_up_weight(parts_w).astype(dtype),
                   "p": _pack_affine(cout, None, p["gamma"], p["beta"])})
        prev_out = cout

    fw = params["feat"]["w"]
    feat = {"w": _pack_up_weight([fw[:hc], fw[hc:]]).astype(dtype),
            "p": _pack_affine(oc, params["feat"]["b"], None, None)}
    return {"down": down, "up": up, "feat": feat}


# ----------------------------------------------------------------------------
# UNetGenerator forward (matches the PyTorch module semantics, eval mode)
# ----------------------------------------------------------------------------
def unet_forward(packed, x_nchw, *, dtype=jnp.bfloat16, cout_tile=256):
    x = x_nchw.astype(dtype)
    skips = []
    n_down = len(packed["down"])
    for i, layer in enumerate(packed["down"]):
        norm = 0 < i < n_down - 1          # first & last Downsampling: norm=False
        x = down_block(x, layer, norm=norm, act="lrelu", dtype=dtype,
                       cout_tile=cout_tile)
        skips.append(x)
    parts = [skips[-1]]                    # concat-free: keep parts separate
    for layer, skip in zip(packed["up"], reversed(skips[:-1])):
        # TODO(synk): Dropout(0.5) on the first three Upsampling blocks is an
        #             eval-mode identity here (inference forward).
        y = up_block(parts, layer, norm=True, act="relu", dtype=dtype,
                     cout_tile=cout_tile)
        parts = [y, skip]                  # torch.cat([x, skip], 1), unmaterialized
    out = up_block(parts, packed["feat"], norm=False, act="tanh", dtype=dtype,
                   cout_tile=cout_tile)
    return out.astype(jnp.float32)


# ----------------------------------------------------------------------------
# Self-test of the tap/phase decompositions against lax.conv references (f32).
# Also exercises the Cout-tiled (2-step) grid axis.
# ----------------------------------------------------------------------------
def _instance_norm_ref(y, gamma, beta, eps=1e-5):
    mean = jnp.mean(y, axis=(2, 3), keepdims=True)
    var = jnp.mean((y - mean) ** 2, axis=(2, 3), keepdims=True)
    return ((y - mean) * lax.rsqrt(var + eps)
            * gamma[None, :, None, None] + beta[None, :, None, None])


def _self_test():
    f32 = jnp.float32
    keys = jax.random.split(jax.random.PRNGKey(42), 10)

    # Downsampling (norm + lrelu), Cout tiled (grid axis of 2)
    x = jax.random.normal(keys[0], (2, 3, 8, 8), f32)
    w = 0.2 * jax.random.normal(keys[1], (16, 3, 4, 4), f32)
    gamma = 1.0 + 0.1 * jax.random.normal(keys[2], (16,), f32)
    beta = 0.1 * jax.random.normal(keys[3], (16,), f32)
    layer = {"w": _pack_down_weight(w), "p": _pack_affine(16, None, gamma, beta)}
    got = down_block(x, layer, norm=True, act="lrelu", dtype=f32, cout_tile=8)
    ref = lax.conv_general_dilated(x, w, (2, 2), [(1, 1), (1, 1)],
                                   dimension_numbers=("NCHW", "OIHW", "NCHW"))
    ref = _instance_norm_ref(ref, gamma, beta)
    ref = jnp.where(ref > 0, ref, 0.2 * ref)
    assert jnp.allclose(got, ref, atol=2e-3, rtol=2e-3), "down_block mismatch"

    # Downsampling (no norm: bias + lrelu)
    b0 = 0.1 * jax.random.normal(keys[4], (16,), f32)
    layer0 = {"w": _pack_down_weight(w), "p": _pack_affine(16, b0, None, None)}
    got0 = down_block(x, layer0, norm=False, act="lrelu", dtype=f32)
    ref0 = lax.conv_general_dilated(x, w, (2, 2), [(1, 1), (1, 1)],
                                    dimension_numbers=("NCHW", "OIHW", "NCHW"))
    ref0 = ref0 + b0[None, :, None, None]
    ref0 = jnp.where(ref0 > 0, ref0, 0.2 * ref0)
    assert jnp.allclose(got0, ref0, atol=2e-3, rtol=2e-3), "down(no-norm) mismatch"

    # Upsampling (two concat parts, norm + relu), Cout tiled
    x1 = jax.random.normal(keys[5], (2, 5, 4, 4), f32)
    x2 = jax.random.normal(keys[6], (2, 3, 4, 4), f32)
    wt = 0.2 * jax.random.normal(keys[7], (8, 16, 4, 4), f32)   # (Cin=5+3, Cout=16)
    g2 = 1.0 + 0.1 * jax.random.normal(keys[8], (16,), f32)
    bt2 = 0.1 * jax.random.normal(keys[9], (16,), f32)
    layer2 = {"w": _pack_up_weight([wt[:5], wt[5:]]),
              "p": _pack_affine(16, None, g2, bt2)}
    got2 = up_block([x1, x2], layer2, norm=True, act="relu", dtype=f32, cout_tile=8)
    xc = jnp.concatenate([x1, x2], axis=1)
    w_eq = jnp.transpose(jnp.flip(wt, (2, 3)), (1, 0, 2, 3))
    ref2 = lax.conv_general_dilated(xc, w_eq, (1, 1), [(2, 2), (2, 2)],
                                    lhs_dilation=(2, 2),
                                    dimension_numbers=("NCHW", "OIHW", "NCHW"))
    ref2 = _instance_norm_ref(ref2, g2, bt2)
    ref2 = jnp.maximum(ref2, 0.0)
    assert jnp.allclose(got2, ref2, atol=2e-3, rtol=2e-3), "up_block mismatch"

    # Feature-style block (no norm: bias + tanh)
    b3 = 0.1 * jax.random.normal(keys[4], (16,), f32)
    layer3 = {"w": _pack_up_weight([wt[:5], wt[5:]]),
              "p": _pack_affine(16, b3, None, None)}
    got3 = up_block([x1, x2], layer3, norm=False, act="tanh", dtype=f32)
    ref3 = lax.conv_general_dilated(xc, w_eq, (1, 1), [(2, 2), (2, 2)],
                                    lhs_dilation=(2, 2),
                                    dimension_numbers=("NCHW", "OIHW", "NCHW"))
    ref3 = jnp.tanh(ref3 + b3[None, :, None, None])
    assert jnp.allclose(got3, ref3, atol=2e-3, rtol=2e-3), "feature block mismatch"


if __name__ == "__main__":
    _self_test()

    config = {"hidden_channels": 4, "in_channels": 3, "out_channels": 3,
              "kernel_size": 4, "stride": 2, "padding": 1}
    root = jax.random.PRNGKey(0)
    pkey, xkey = jax.random.split(root)
    params = init_params(pkey, config)
    packed = prepare_params(params, config)     # pack weights once, outside jit

    # 8 stride-2 downsamples (256 -> ... -> 1 at the bottleneck) and the skip
    # concats require a 256x256 input; the generator returns the same resolution.
    N, H = 2, 256
    x = jax.random.normal(xkey, (N, config["in_channels"], H, H), jnp.float32)

    fwd = jax.jit(unet_forward)
    out = fwd(packed, x)
    jax.block_until_ready(out)

    assert out.shape == (N, config["out_channels"], H, H), out.shape
    assert bool(jnp.all(jnp.isfinite(out))), "non-finite output"
    print("KERNEL_OK")
</pallas_src>

<mosaic_0001>
module attributes {stable_mosaic.version = 11 : i64} {
  func.func @_down_kernel(%arg0: i32, %arg1: i32, %arg2: memref<1x16x128xf32, #tpu.memory_space<vmem>>, %arg3: memref<8x64xf32, #tpu.memory_space<vmem>>, %arg4: memref<8x3xf32, #tpu.memory_space<vmem>>, %arg5: memref<1x8x20xf32, #tpu.memory_space<vmem>>) attributes {dimension_semantics = [#tpu.dimension_semantics<parallel>, #tpu.dimension_semantics<parallel>], iteration_bounds = array<i64: 2, 2>, scalar_prefetch = 0 : i64, scratch_operands = 0 : i64, tpu.core_type = #tpu.core_type<tc>, window_params = [{transform_indices = @transform_0, window_bounds = array<i64: 1, 16, 128>}, {transform_indices = @transform_1, window_bounds = array<i64: 8, 64>}, {transform_indices = @transform_2, window_bounds = array<i64: 8, 3>}, {transform_indices = @transform_3, window_bounds = array<i64: 1, 8, 20>}]} {
    %c0 = arith.constant 0 : index
    %c0_0 = arith.constant 0 : index
    %c0_1 = arith.constant 0 : index
    %0 = vector.load %arg2[%c0, %c0_0, %c0_1] : memref<1x16x128xf32, #tpu.memory_space<vmem>>, vector<1x16x20xf32>
    %1 = vector.shape_cast %0 : vector<1x16x20xf32> to vector<16x20xf32>
    %c0_2 = arith.constant 0 : index
    %c0_3 = arith.constant 0 : index
    %c1 = arith.constant 1 : index
    %2 = vector.load %arg2[%c0_2, %c0_3, %c1] : memref<1x16x128xf32, #tpu.memory_space<vmem>>, vector<1x16x20xf32>
    %3 = vector.shape_cast %2 : vector<1x16x20xf32> to vector<16x20xf32>
    %c0_4 = arith.constant 0 : index
    %c0_5 = arith.constant 0 : index
    %c5 = arith.constant 5 : index
    %4 = vector.load %arg2[%c0_4, %c0_5, %c5] : memref<1x16x128xf32, #tpu.memory_space<vmem>>, vector<1x16x20xf32>
    %5 = vector.shape_cast %4 : vector<1x16x20xf32> to vector<16x20xf32>
    %c0_6 = arith.constant 0 : index
    %c0_7 = arith.constant 0 : index
    %c6 = arith.constant 6 : index
    %6 = vector.load %arg2[%c0_6, %c0_7, %c6] : memref<1x16x128xf32, #tpu.memory_space<vmem>>, vector<1x16x20xf32>
    %7 = vector.shape_cast %6 : vector<1x16x20xf32> to vector<16x20xf32>
    %8 = tpu.concatenate %1, %3, %5, %7 in 0 : vector<16x20xf32>, vector<16x20xf32>, vector<16x20xf32>, vector<16x20xf32> -> vector<64x20xf32>
    %c0_8 = arith.constant 0 : index
    %c0_9 = arith.constant 0 : index
    %9 = vector.load %arg3[%c0_8, %c0_9] : memref<8x64xf32, #tpu.memory_space<vmem>>, vector<8x64xf32>
    %cst = arith.constant dense<0.000000e+00> : vector<8x20xf32>
    %10 = tpu.matmul %9, %8, %cst {dimension_numbers = #tpu.dot_dimension_numbers<[1], [0], [0], [1], [0, 0, 1, 1], [], []>} : vector<8x64xf32>, vector<64x20xf32>, vector<8x20xf32> -> vector<8x20xf32>
    %11 = tpu.iota {dimensions = array<i32: 1>} : vector<1x20xi32>
    %c5_i32 = arith.constant 5 : i32
    %c0_i32 = arith.constant 0 : i32
    %12 = arith.cmpi eq, %c5_i32, %c0_i32 : i32
    %c1_i32 = arith.constant 1 : i32
    %13 = arith.select %12, %c1_i32, %c5_i32 : i32
    %14 = vector.broadcast %13 : i32 to vector<1x20xi32>
    %15 = arith.remsi %11, %14 : vector<1x20xi32>
    %c0_i32_10 = arith.constant 0 : i32
    %16 = vector.broadcast %c0_i32_10 : i32 to vector<1x20xi32>
    %17 = arith.cmpi ne, %15, %16 : vector<1x20xi32>
    %c0_i32_11 = arith.constant 0 : i32
    %18 = vector.broadcast %c0_i32_11 : i32 to vector<1x20xi32>
    %19 = arith.cmpi slt, %15, %18 : vector<1x20xi32>
    %c0_i32_12 = arith.constant 0 : i32
    %20 = arith.cmpi slt, %13, %c0_i32_12 : i32
    %21 = vector.broadcast %20 : i1 to vector<1x20xi1>
    %22 = vector.broadcast %21 : vector<1x20xi1> to vector<1x20xi1>
    %23 = arith.xori %19, %22 : vector<1x20xi1>
    %24 = arith.andi %23, %17 : vector<1x20xi1>
    %25 = vector.broadcast %13 : i32 to vector<1x20xi32>
    %26 = arith.addi %15, %25 : vector<1x20xi32>
    %27 = arith.select %24, %26, %15 : vector<1x20xi1>, vector<1x20xi32>
    %c4_i32 = arith.constant 4 : i32
    %28 = vector.broadcast %c4_i32 : i32 to vector<1x20xi32>
    %29 = arith.cmpi slt, %27, %28 : vector<1x20xi32>
    %cst_13 = arith.constant 0.000000e+00 : f32
    %30 = vector.shape_cast %29 : vector<1x20xi1> to vector<1x20xi1>
    %31 = vector.broadcast %30 : vector<1x20xi1> to vector<8x20xi1>
    %32 = vector.broadcast %cst_13 : f32 to vector<8x20xf32>
    %33 = arith.select %31, %10, %32 : vector<8x20xi1>, vector<8x20xf32>
    %cst_14 = arith.constant dense<0.000000e+00> : vector<8xf32>
    %34 = vector.multi_reduction <add>, %33, %cst_14 [1] : vector<8x20xf32> to vector<8xf32>
    %35 = vector.shape_cast %34 : vector<8xf32> to vector<8x1xf32>
    %36 = arith.mulf %33, %33 : vector<8x20xf32>
    %cst_15 = arith.constant dense<0.000000e+00> : vector<8xf32>
    %37 = vector.multi_reduction <add>, %36, %cst_15 [1] : vector<8x20xf32> to vector<8xf32>
    %38 = vector.shape_cast %37 : vector<8xf32> to vector<8x1xf32>
    %cst_16 = arith.constant 6.250000e-02 : f32
    %39 = vector.broadcast %cst_16 : f32 to vector<8x1xf32>
    %40 = arith.mulf %35, %39 : vector<8x1xf32>
    %cst_17 = arith.constant 6.250000e-02 : f32
    %41 = vector.broadcast %cst_17 : f32 to vector<8x1xf32>
    %42 = arith.mulf %38, %41 : vector<8x1xf32>
    %43 = arith.mulf %40, %40 : vector<8x1xf32>
    %44 = arith.subf %42, %43 : vector<8x1xf32>
    %cst_18 = arith.constant 0.000000e+00 : f32
    %45 = vector.broadcast %cst_18 : f32 to vector<8x1xf32>
    %46 = arith.maximumf %44, %45 : vector<8x1xf32>
    %cst_19 = arith.constant 9.99999974E-6 : f32
    %47 = vector.broadcast %cst_19 : f32 to vector<8x1xf32>
    %48 = arith.addf %46, %47 : vector<8x1xf32>
    %49 = math.rsqrt %48 : vector<8x1xf32>
    %c0_20 = arith.constant 0 : index
    %c1_21 = arith.constant 1 : index
    %50 = vector.load %arg4[%c0_20, %c1_21] : memref<8x3xf32, #tpu.memory_space<vmem>>, vector<8x1xf32>
    %51 = arith.mulf %49, %50 : vector<8x1xf32>
    %c0_22 = arith.constant 0 : index
    %c2 = arith.constant 2 : index
    %52 = vector.load %arg4[%c0_22, %c2] : memref<8x3xf32, #tpu.memory_space<vmem>>, vector<8x1xf32>
    %53 = arith.mulf %40, %51 : vector<8x1xf32>
    %54 = arith.subf %52, %53 : vector<8x1xf32>
    %55 = vector.broadcast %51 : vector<8x1xf32> to vector<8x20xf32>
    %56 = arith.mulf %10, %55 : vector<8x20xf32>
    %57 = vector.broadcast %54 : vector<8x1xf32> to vector<8x20xf32>
    %58 = arith.addf %56, %57 : vector<8x20xf32>
    %cst_23 = arith.constant 2.000000e-01 : f32
    %59 = vector.broadcast %cst_23 : f32 to vector<8x20xf32>
    %60 = arith.mulf %59, %58 : vector<8x20xf32>
    %61 = arith.maximumf %58, %60 : vector<8x20xf32>
    %c0_24 = arith.constant 0 : index
    %c0_25 = arith.constant 0 : index
    %c0_26 = arith.constant 0 : index
    %62 = vector.load %arg5[%c0_24, %c0_25, %c0_26] : memref<1x8x20xf32, #tpu.memory_space<vmem>>, vector<1x8x20xf32>
    %63 = vector.shape_cast %62 : vector<1x8x20xf32> to vector<8x20xf32>
    %64 = vector.shape_cast %61 : vector<8x20xf32> to vector<1x8x20xf32>
    tpu.vector_store %arg5[%c0_24, %c0_25, %c0_26], %64 {strides = array<i32>} : memref<1x8x20xf32, #tpu.memory_space<vmem>>, vector<1x8x20xf32>,
    return
  }
  func.func @transform_0(%arg0: i32, %arg1: i32) -> (i32, i32, i32) {
    %c0_i32 = arith.constant 0 : i32
    %c0_i32_0 = arith.constant 0 : i32
    %c0_i32_1 = arith.constant 0 : i32
    return %arg0, %c0_i32, %c0_i32_0 : i32, i32, i32
  }
  func.func @transform_1(%arg0: i32, %arg1: i32) -> (i32, i32) {
    %c0_i32 = arith.constant 0 : i32
    %c0_i32_0 = arith.constant 0 : i32
    return %arg1, %c0_i32 : i32, i32
  }
  func.func @transform_2(%arg0: i32, %arg1: i32) -> (i32, i32) {
    %c0_i32 = arith.constant 0 : i32
    %c0_i32_0 = arith.constant 0 : i32
    return %arg1, %c0_i32 : i32, i32
  }
  func.func @transform_3(%arg0: i32, %arg1: i32) -> (i32, i32, i32) {
    %c0_i32 = arith.constant 0 : i32
    %c0_i32_0 = arith.constant 0 : i32
    return %arg0, %arg1, %c0_i32 : i32, i32, i32
  }
}

</mosaic_0001>

<llo_original>
// kernel: tpu_custom_call.1
$region0: #{tpu_custom_call.1}
  #allocation0 [shape = 'u32[]', space=smem, size = 0x4, offset = 0x4, fixed_abs, tag = 'smem constant byte address 0x4 - core index']
  #allocation1 [shape = 'u32[144,128]{1,0:T(1,128)}', space=vmem, size = 0x12000, scoped, tag = 'internal scratch']
  %s0 = inlined_call_operand.hbm [shape: f32[2,16,128], index: 0, kind: input, shape index: {}]
  %s1 = inlined_call_operand.vmem [shape: f32[16,64], index: 1, kind: input, shape index: {}]
  %s2 = inlined_call_operand.vmem [shape: f32[16,3], index: 2, kind: input, shape index: {}]
  %s3 = inlined_call_operand.hbm [shape: f32[2,16,20], index: 3, kind: output, shape index: {}]
  %s4 = sld [smem:[#allocation0]]
  $region49: #{tpu_custom_call.1} parent=0
    _
  %s6 = ssub.s32 1, %s4
  %s7 = scalar_select 0, %s6, %s4
  $region1: #{tpu_custom_call.1} parent=0
    #allocation2 [shape = 'u8[16384]{0}', space=vmem, size = 0x4000, scoped, tag = 'input window, operand 0']
    #allocation3 [shape = 's32[2]{0}', space=sflag, size = 0x8, scoped, tag = 'scoped memory for tpu_custom_call.1']
    #allocation4 [shape = 's32[2]{0}', space=sflag, size = 0x8, scoped, tag = 'scoped memory for tpu_custom_call.1']
    #allocation5 [shape = 'u8[8192]{0}', space=vmem, size = 0x2000, scoped, tag = 'output window, operand 0']
    %8 = vsyncpa [#allocation3], 0
    %s9 = scalar_lea.sflag [#allocation3], 1
    %10 = vsyncpa %s9, 0
    %11 = vsyncpa [#allocation4], 0
    %s12 = scalar_lea.sflag [#allocation4], 1
    %13 = vsyncpa %s12, 0
    loop: start=0, step=1, limit=6
    $region2: #{tpu_custom_call.1} parent=1 // loop_pre_header
      _
    $region3: #{tpu_custom_call.1} parent=1 // loop_header
      %s15 = sphi 0, %s19
      %p16 = scmp.ge.s32.totalorder %s15, 6
      %s22 = sphi 0, %s34
      %s23 = sphi 0, %s30
      %s24 = sphi 0, %s22
      %s25 = sphi 0, %s23
      %s26 = sphi 0, %s24
      %s27 = sphi 0, %s25
      %s37 = sphi 0, %s39
      %s40 = sphi 0, %s37
      %s41 = sphi 0, %s40
      %s57 = sphi 0, %s41
      %s63 = sphi 0, %s65
      %s66 = sphi 0, %s63
      %s67 = sphi 0, %s66
      %s83 = sphi 0, %s67
      %s89 = sphi 0, %s91
      %s92 = sphi 0, %s89
      %s93 = sphi 0, %s92
      %s109 = sphi 0, %s93
      %s117 = sphi 0, %s119
      %s120 = sphi 0, %s117
      %s121 = sphi 0, %s120
      %s137 = sphi 0, %s121
    $region4: #{tpu_custom_call.1} parent=1 // loop_header_branch
      %18 = sbr.rel (%p16) target = $region8
    $region5: #{tpu_custom_call.1} parent=1 // loop_body
      %s20 = ssub.s32 %s15, 1
      %s21 = ssub.s32 %s15, 2
      %s28 = sadd.s32 1, %s23
      %p29 = scmp.ge.s32.totalorder %s28, 2
      %s30 = scalar_select %p29, 0, %s28
      %s31 = sadd.s32 1, %s22
      %s32 = scalar_select %p29, %s31, %s22
      %p33 = scmp.ge.s32.totalorder %s32, 2
      %s34 = scalar_select %p33, 0, %s32
      %s35 = ssub.s32 %s22, %s34
      %p36 = scmp.eq.s32.totalorder %s35, 0
      %s38 = sadd.s32 %s37, 1
      %s39 = scalar_select %p36, %s37, %s38
      %p42 = pneg %p36
      %p43 = scmp.eq.s32.totalorder %s15, 3
      %p44 = por %p42, %p43
      %p45 = scmp.ne.s32.totalorder %s37, %s40
      %p46 = scmp.eq.s32.totalorder %s15, 0
      %p47 = por %p45, %p46
      %p48 = scmp.ne.s32.totalorder %s37, %s40
      %p49 = scmp.eq.s32.totalorder %s20, 3
      %p50 = por %p48, %p49
      %p51 = scmp.ne.s32.totalorder %s40, %s41
      %p52 = scmp.eq.s32.totalorder %s20, 0
      %p53 = por %p51, %p52
      %p54 = scmp.ne.s32.totalorder %s40, %s41
      %p55 = scmp.eq.s32.totalorder %s21, 3
      %p56 = por %p54, %p55
      %p58 = scmp.ne.s32.totalorder %s41, %s57
      %p59 = scmp.eq.s32.totalorder %s21, 0
      %p60 = por %p58, %p59
      %s61 = ssub.s32 %s23, %s30
      %p62 = scmp.eq.s32.totalorder %s61, 0
      %s64 = sadd.s32 %s63, 1
      %s65 = scalar_select %p62, %s63, %s64
      %p68 = pneg %p62
      %p69 = scmp.eq.s32.totalorder %s15, 3
      %p70 = por %p68, %p69
      %p71 = scmp.ne.s32.totalorder %s63, %s66
      %p72 = scmp.eq.s32.totalorder %s15, 0
      %p73 = por %p71, %p72
      %p74 = scmp.ne.s32.totalorder %s63, %s66
      %p75 = scmp.eq.s32.totalorder %s20, 3
      %p76 = por %p74, %p75
      %p77 = scmp.ne.s32.totalorder %s66, %s67
      %p78 = scmp.eq.s32.totalorder %s20, 0
      %p79 = por %p77, %p78
      %p80 = scmp.ne.s32.totalorder %s66, %s67
      %p81 = scmp.eq.s32.totalorder %s21, 3
      %p82 = por %p80, %p81
      %p84 = scmp.ne.s32.totalorder %s67, %s83
      %p85 = scmp.eq.s32.totalorder %s21, 0
      %p86 = por %p84, %p85
      %s87 = ssub.s32 %s23, %s30
      %p88 = scmp.eq.s32.totalorder %s87, 0
      %s90 = sadd.s32 %s89, 1
      %s91 = scalar_select %p88, %s89, %s90
      %p94 = pneg %p88
      %p95 = scmp.eq.s32.totalorder %s15, 3
      %p96 = por %p94, %p95
      %p97 = scmp.ne.s32.totalorder %s89, %s92
      %p98 = scmp.eq.s32.totalorder %s15, 0
      %p99 = por %p97, %p98
      %p100 = scmp.ne.s32.totalorder %s89, %s92
      %p101 = scmp.eq.s32.totalorder %s20, 3
      %p102 = por %p100, %p101
      %p103 = scmp.ne.s32.totalorder %s92, %s93
      %p104 = scmp.eq.s32.totalorder %s20, 0
      %p105 = por %p103, %p104
      %p106 = scmp.ne.s32.totalorder %s92, %s93
      %p107 = scmp.eq.s32.totalorder %s21, 3
      %p108 = por %p106, %p107
      %p110 = scmp.ne.s32.totalorder %s93, %s109
      %p111 = scmp.eq.s32.totalorder %s21, 0
      %p112 = por %p110, %p111
      %s113 = ssub.s32 %s22, %s34
      %s114 = ssub.s32 %s23, %s30
      %s115 = sor.u32 %s113, %s114
      %p116 = scmp.eq.s32.totalorder %s115, 0
      %s118 = sadd.s32 %s117, 1
      %s119 = scalar_select %p116, %s117, %s118
      %p122 = pneg %p116
      %p123 = scmp.eq.s32.totalorder %s15, 3
      %p124 = por %p122, %p123
      %p125 = scmp.ne.s32.totalorder %s117, %s120
      %p126 = scmp.eq.s32.totalorder %s15, 0
      %p127 = por %p125, %p126
      %p128 = scmp.ne.s32.totalorder %s117, %s120
      %p129 = scmp.eq.s32.totalorder %s20, 3
      %p130 = por %p128, %p129
      %p131 = scmp.ne.s32.totalorder %s120, %s121
      %p132 = scmp.eq.s32.totalorder %s20, 0
      %p133 = por %p131, %p132
      %p134 = scmp.ne.s32.totalorder %s120, %s121
      %p135 = scmp.eq.s32.totalorder %s21, 3
      %p136 = por %p134, %p135
      %p138 = scmp.ne.s32.totalorder %s121, %s137
      %p139 = scmp.eq.s32.totalorder %s21, 0
      %p140 = por %p138, %p139
      %p141 = scmp.le.s32.totalorder 1, %s15
      %p142 = scmp.lt.s32.totalorder %s15, 5
      %p143 = pnand %p141, %p142
      %p144 = pneg %p143
      // Predicated region
      $region9: #{tpu_custom_call.1} parent=5 // pred_check
        _
      $region10: #{tpu_custom_call.1} parent=5 // pred_check_branch
        %146 = sbr.rel (%p143) target = $region12
      $region11: #{tpu_custom_call.1} parent=5 // pred_region
        %s147 = ssub.s32 %s15, 1
      $region12: #{tpu_custom_call.1} parent=5 // pred_fallthru
        _
      %p148 = scmp.lt.s32.totalorder %s15, 4
      // Predicated region
      $region13: #{tpu_custom_call.1} parent=5 // pred_check
        %p149 = pneg %p148
      $region14: #{tpu_custom_call.1} parent=5 // pred_check_branch
        %151 = sbr.rel (%p149) target = $region16
      $region15: #{tpu_custom_call.1} parent=5 // pred_region
        // Predicated region
        $region17: #{tpu_custom_call.1} parent=15 // pred_check
          %p152 = pneg %p47
        $region18: #{tpu_custom_call.1} parent=15 // pred_check_branch
          %154 = sbr.rel (%p152) target = $region20
        $region19: #{tpu_custom_call.1} parent=15 // pred_region
          %s155 = sand.u32 %s37, 1
          %s156 = scalar_lea.sflag [#allocation3], %s155
          %s157 = sand.u32 %s37, 1
          %s158 = smul.addr %s157, 16
          %s159 = scalar_lea.vmem [#allocation2], %s158
          %s161 = ssub.s32 256, 256
          %162 = vsyncadd %s156, %s161
          %s163 = smul.addr %s22, 2
          %s164 = smul.addr %s163, 128
          %s165 = scalar_lea.hbm %s0, %s164
          %s166 = sshll.u32 %s159, 4
          %s167 = int_to_ptr.vmem [resolvable:$true] %s166
          %172 = dma.hbm_to_vmem [thread:$0]  %s165, 256, %s167, %s156, 128, 128, 8
        $region20: #{tpu_custom_call.1} parent=15 // pred_fallthru
          _
        // Predicated region
        $region21: #{tpu_custom_call.1} parent=15 // pred_check
          %p173 = pneg %p73
        $region22: #{tpu_custom_call.1} parent=15 // pred_check_branch
          %175 = sbr.rel (%p173) target = $region24
        $region23: #{tpu_custom_call.1} parent=15 // pred_region
          %p176 = scmp.lt.s32.totalorder %s23, 1
          %s177 = scalar_select %p176, %s23, 1
          %s178 = smul.addr %s177, 8
          %s179 = scalar_lea.vmem %s1, %s178
        $region24: #{tpu_custom_call.1} parent=15 // pred_fallthru
          _
        // Predicated region
        $region25: #{tpu_custom_call.1} parent=15 // pred_check
          %p180 = pneg %p99
        $region26: #{tpu_custom_call.1} parent=15 // pred_check_branch
          %182 = sbr.rel (%p180) target = $region28
        $region27: #{tpu_custom_call.1} parent=15 // pred_region
          %p183 = scmp.lt.s32.totalorder %s23, 1
          %s184 = scalar_select %p183, %s23, 1
          %s185 = smul.addr %s184, 8
          %s186 = scalar_lea.vmem %s2, %s185
        $region28: #{tpu_custom_call.1} parent=15 // pred_fallthru
          _
      $region16: #{tpu_custom_call.1} parent=5 // pred_fallthru
        _
      %p187 = scmp.le.s32.totalorder 1, %s15
      %p188 = scmp.lt.s32.totalorder %s15, 5
      %p189 = pnand %p187, %p188
      %p190 = pneg %p189
      // Predicated region
      $region29: #{tpu_custom_call.1} parent=5 // pred_check
        _
      $region30: #{tpu_custom_call.1} parent=5 // pred_check_branch
        %192 = sbr.rel (%p189) target = $region32
      $region31: #{tpu_custom_call.1} parent=5 // pred_region
        %s193 = ssub.s32 %s15, 1
        %s194 = sand.u32 %s40, 1
        %s195 = scalar_lea.sflag [#allocation3], %s194
        %s196 = sand.u32 %s40, 1
        %s197 = smul.addr %s196, 16
        %s198 = scalar_lea.vmem [#allocation2], %s197
        // Predicated region
        $region33: #{tpu_custom_call.1} parent=31 // pred_check
          %p199 = pneg %p53
        $region34: #{tpu_custom_call.1} parent=31 // pred_check_branch
          %201 = sbr.rel (%p199) target = $region36
        $region35: #{tpu_custom_call.1} parent=31 // pred_region
          %202 = dma.done %s195, 256
        $region36: #{tpu_custom_call.1} parent=31 // pred_fallthru
          _
        %s203 = sand.u32 %s40, 1
        %s204 = scalar_lea.sflag [#allocation3], %s203
        %s205 = sand.u32 %s40, 1
        %s206 = smul.addr %s205, 16
        %s207 = scalar_lea.vmem [#allocation2], %s206
        %p208 = pneg %p53
        %p209 = pneg %p50
        %p210 = scmp.lt.s32.totalorder %s25, 1
        %s211 = scalar_select %p210, %s25, 1
        %s212 = smul.addr %s211, 8
        %s213 = scalar_lea.vmem %s1, %s212
        %p214 = pneg %p79
        %p215 = pneg %p76
        %p216 = scmp.lt.s32.totalorder %s25, 1
        %s217 = scalar_select %p216, %s25, 1
        %s218 = smul.addr %s217, 8
        %s219 = scalar_lea.vmem %s2, %s218
        %p220 = pneg %p105
        %p221 = pneg %p102
        %p222 = pneg %p133
        %p223 = pneg %p130
        %s224 = sand.u32 %s120, 1
        %s225 = scalar_lea.sflag [#allocation4], %s224
        %s226 = sand.u32 %s120, 1
        %s227 = smul.addr %s226, 8
        %s228 = scalar_lea.vmem [#allocation5], %s227
        %p229 = scmp.lt.s32.totalorder %s25, 1
        %s230 = scalar_select %p229, %s25, 1
        %s231 = smul.addr %s230, 8
        %s232 = scalar_lea.vmem %s1, %s231
        %p233 = scmp.lt.s32.totalorder %s25, 1
        %s234 = scalar_select %p233, %s25, 1
        %s235 = smul.addr %s234, 8
        %s236 = scalar_lea.vmem %s2, %s235
        %v237 = vld [vmem:[%s198] sm:$0xff]
        %v238 = vld [vmem:[%s198 + $0x8] sm:$0xff]
        %241 = vrot.lane.b32.xlu0 %v237, 127
        %v242 = vpop.permute.xlu0 %241
        %243 = vrot.lane.b32.xlu0 %v238, 127
        %v244 = vpop.permute.xlu0 %243
        %247 = vrot.lane.b32.xlu0 %v237, 123
        %v248 = vpop.permute.xlu0 %247
        %249 = vrot.lane.b32.xlu0 %v238, 123
        %v250 = vpop.permute.xlu0 %249
        %253 = vrot.lane.b32.xlu0 %v237, 122
        %v254 = vpop.permute.xlu0 %253
        %255 = vrot.lane.b32.xlu0 %v238, 122
        %v256 = vpop.permute.xlu0 %255
        %v259 = vld [vmem:[%s232] sm:$0xff]
        %vm260 = vcmask 523264
        %v262 = vsel %vm260, %v259, 0
        %264 = vmatprep.subr.mxu0 0.0
        %265 = vmatpush1.msra.mxu0 %v237
        %266 = vmatprep.subr.mxu0 0.0
        %267 = vmatpush1.msra.mxu0 %v238
        %268 = vmatprep.subr.mxu0 0.0
        %269 = vmatpush1.msra.mxu0 %v242
        %270 = vmatprep.subr.mxu0 0.0
        %271 = vmatpush1.msra.mxu0 %v244
        %272 = vmatprep.subr.mxu0 0.0
        %273 = vmatpush1.msra.mxu0 %v248
        %274 = vmatprep.subr.mxu0 0.0
        %275 = vmatpush1.msra.mxu0 %v250
        %276 = vmatprep.subr.mxu0 0.0
        %277 = vmatpush1.msra.mxu0 %v254
        %278 = vmatprep.subr.mxu0 0.0
        %279 = vmatpush1.msra.mxu0 %v256
        %280 = vmatprep.subr.mxu0 0.0
        %281 = vmatpush1.msra.mxu0 0.0
        %282 = vmatprep.subr.mxu0 0.0
        %283 = vmatpush1.msra.mxu0 0.0
        %284 = vmatprep.subr.mxu0 0.0
        %285 = vmatpush1.msra.mxu0 0.0
        %286 = vmatprep.subr.mxu0 0.0
        %287 = vmatpush1.msra.mxu0 0.0
        %288 = vmatprep.subr.mxu0 0.0
        %289 = vmatpush1.msra.mxu0 0.0
        %290 = vmatprep.subr.mxu0 0.0
        %291 = vmatpush1.msra.mxu0 0.0
        %292 = vmatprep.subr.mxu0 0.0
        %293 = vmatpush1.msra.mxu0 0.0
        %294 = vmatprep.subr.mxu0 0.0
        %295 = vmatpush1.msra.mxu0 0.0
        %296 = vmatprep.subr.mxu0 0.0
        %297 = vmatpush1.msra.mxu0 0.0
        %298 = vmatprep.subr.mxu0 0.0
        %299 = vmatpush1.msra.mxu0 0.0
        %300 = vmatprep.subr.mxu0 0.0
        %301 = vmatpush1.msra.mxu0 0.0
        %302 = vmatprep.subr.mxu0 0.0
        %303 = vmatpush1.msra.mxu0 0.0
        %304 = vmatprep.subr.mxu0 0.0
        %305 = vmatpush1.msra.mxu0 0.0
        %306 = vmatprep.subr.mxu0 0.0
        %307 = vmatpush1.msra.mxu0 0.0
        %308 = vmatprep.subr.mxu0 0.0
        %309 = vmatpush1.msra.mxu0 0.0
        %310 = vmatprep.subr.mxu0 0.0
        %311 = vmatpush1.msra.mxu0 0.0
        %312 = vmatprep.subr.mxu0 0.0
        %313 = vmatpush1.msra.mxu0 0.0
        %314 = vmatprep.subr.mxu0 0.0
        %315 = vmatpush1.msra.mxu0 0.0
        %316 = vmatprep.subr.mxu0 0.0
        %317 = vmatpush1.msra.mxu0 0.0
        %318 = vmatprep.subr.mxu0 0.0
        %319 = vmatpush1.msra.mxu0 0.0
        %320 = vmatprep.subr.mxu0 0.0
        %321 = vmatpush1.msra.mxu0 0.0
        %322 = vmatprep.subr.mxu0 0.0
        %323 = vmatpush1.msra.mxu0 0.0
        %324 = vmatprep.subr.mxu0 0.0
        %325 = vmatpush1.msra.mxu0 0.0
        %326 = vmatprep.subr.mxu0 0.0
        %327 = vmatpush1.msra.mxu0 0.0
        %328 = vmatprep.mubr.f32.mxu0 0.0
        %329 = vmatmul.mubr.f32.gmra.mrb[0].mxu0 %v262
        %v330 = vpop.f32.mrb[0].mxu0
        %v331 = vadd.f32 0.0, %v330
        %v332 = vpop.f32.mrb[0].mxu0
        %333 = vdwg.mxu0
        %v334 = vlaneseq
        %v335 = vand.u32 %v334, 127
        %vm336 = vcmp.lt.s32.totalorder %v335, 0
        %v337 = vsub.s32 0, %v335
        %v338 = vsel %vm336, %v337, %v335
        %v339 = vmul.u32.u64.compose %v338, 3435973837
        %v340 = vextract.low.u32 %v339
        %v341 = vextract.high.u32 %v339
        %v342 = vshrl.u32 %v341, 2
        %v343 = vmul.u32 %v342, 5
        %v344 = vsub.s32 %v338, %v343
        %v345 = vsub.s32 0, %v344
        %v346 = vsel %vm336, %v345, %v344
        %vm347 = vcmp.ne.s32.totalorder %v346, 0
        %vm348 = vcmp.lt.s32.totalorder %v346, 0
        %vm349 = vmand %vm348, %vm347
        %v350 = vadd.s32 %v346, 5
        %v351 = vsel %vm349, %v350, %v346
        %vm352 = vcmp.lt.s32.totalorder %v351, 4
        %v353 = vsel %vm352, 1, 0
        %vm354 = vcmp.eq.s32.totalorder %v353, 1
        %v355 = vsel %vm354, %v331, 0.0
        %vm356 = vcmask 162816
        %v357 = vsel %vm356, %v355, 0.0
        %358 = vadd.xlane.f32.xlu0 %v357
        %v359 = vpop.xlane.xlu0 %358
        %v360 = vmul.f32 %v355, %v355
        %v361 = vsel %vm356, %v360, 0.0
        %362 = vadd.xlane.f32.xlu0 %v361
        %v363 = vpop.xlane.xlu0 %362
        %v364 = vmul.f32 %v359, 0.0625
        %v365 = vmul.f32 %v363, 0.0625
        %v366 = vmul.f32 %v364, %v364
        %v367 = vsub.f32 %v365, %v366
        %v368 = vmax.f32 %v367, 0.0
        %v369 = vadd.f32 %v368, 1e-05
        %v370 = vrsqrt.pop %v369
        %v371 = vld [vmem:[%s236] sm:$0xff]
        %v372 = vmul.f32 %v370, %v371
        %v373 = vmul.f32 %v364, %v372
        %375 = vrot.lane.b32.xlu0 %v373, 1
        %v376 = vpop.permute.xlu0 %375
        %v378 = vsub.f32 %v371, %v376
        %380 = vset.pattern.permute.xlu0 1
        %381 = vperm.xlu0 %380, %v372
        %v382 = vpop.permute.xlu0 %381
        %v384 = vmul.f32 %v331, %v382
        %386 = vset.pattern.permute.xlu0 2
        %387 = vperm.xlu0 %386, %v378
        %v388 = vpop.permute.xlu0 %387
        %v390 = vadd.f32 %v384, %v388
        %v391 = vmul.f32 %v390, 0.2
        %v392 = vmax.f32 %v390, %v391
        %393 = vst.msk [vmem:[%s228] sm:$0xff] %vm356, %v392
        %s394 = sand.u32 %s120, 1
        %s395 = scalar_lea.sflag [#allocation4], %s394
        %s396 = sand.u32 %s120, 1
        %s397 = smul.addr %s396, 8
        %s398 = scalar_lea.vmem [#allocation5], %s397
        // Predicated region
        $region37: #{tpu_custom_call.1} parent=31 // pred_check
          %p399 = pneg %p130
        $region38: #{tpu_custom_call.1} parent=31 // pred_check_branch
          %401 = sbr.rel (%p399) target = $region40
        $region39: #{tpu_custom_call.1} parent=31 // pred_region
          %s403 = ssub.s32 128, 128
          %404 = vsyncadd %s395, %s403
          %s405 = smul.addr %s24, 2
          %s406 = sadd.s32 %s25, %s405
          %s407 = smul.addr %s406, 128
          %s408 = scalar_lea.hbm %s3, %s407
          %s410 = sshll.u32 %s398, 4
          %s411 = int_to_ptr.vmem [resolvable:$true] %s410
          %413 = dma.vmem_to_hbm [thread:$0]  %s411, 128, %s408, %s395
        $region40: #{tpu_custom_call.1} parent=31 // pred_fallthru
          _
      $region32: #{tpu_custom_call.1} parent=5 // pred_fallthru
        _
      %p414 = scmp.le.s32.totalorder 2, %s15
      // Predicated region
      $region41: #{tpu_custom_call.1} parent=5 // pred_check
        %p415 = pneg %p414
      $region42: #{tpu_custom_call.1} parent=5 // pred_check_branch
        %417 = sbr.rel (%p415) target = $region44
      $region43: #{tpu_custom_call.1} parent=5 // pred_region
        %s418 = ssub.s32 %s15, 2
        // Predicated region
        $region45: #{tpu_custom_call.1} parent=43 // pred_check
          %p419 = pneg %p136
        $region46: #{tpu_custom_call.1} parent=43 // pred_check_branch
          %421 = sbr.rel (%p419) target = $region48
        $region47: #{tpu_custom_call.1} parent=43 // pred_region
          %s422 = sand.u32 %s121, 1
          %s423 = scalar_lea.sflag [#allocation4], %s422
          %s424 = sand.u32 %s121, 1
          %s425 = smul.addr %s424, 8
          %s426 = scalar_lea.vmem [#allocation5], %s425
          %427 = dma.done %s423, 128
        $region48: #{tpu_custom_call.1} parent=43 // pred_fallthru
          _
      $region44: #{tpu_custom_call.1} parent=5 // pred_fallthru
        _
    $region6: #{tpu_custom_call.1} parent=1 // loop_footer
      %s19 = sadd.s32 1, %s15
    $region7: #{tpu_custom_call.1} parent=1 // loop_footer_branch
      %14 = sbr.rel target = $region3
    $region8: #{tpu_custom_call.1} parent=1 // loop_exit
      _
    %428 = vsyncpa [#allocation3], 1
    %s429 = scalar_lea.sflag [#allocation3], 1
    %430 = vsyncpa %s429, 1
    %431 = vsyncpa [#allocation4], 1
    %s432 = scalar_lea.sflag [#allocation4], 1
    %433 = vsyncpa %s432, 1

</llo_original>
